<compile_context>
chip_gen: v6e
topology: v6e:2x2x1
jax: 0.10.0
libtpu: 0.0.40
codegen_flags: <defaults>
</compile_context>

<pallas_src>
import functools

import jax
import jax.numpy as jnp
from jax.experimental import pallas as pl
from jax.experimental.pallas import tpu as pltpu

EPS_LN = 1e-5


@functools.lru_cache(maxsize=None)
def _vmem_limit_bytes():
    """Generation-aware scoped-VMEM budget: ~75% of physical VMEM."""
    try:
        cap = int(pltpu.get_tpu_info().vmem_capacity_bytes)
        if cap > 0:
            return int(cap * 0.75)
    except Exception:
        pass
    return 64 * 1024 * 1024


def _pick_batch_tile(batch, max_tile=8):
    """Largest divisor of `batch` that is <= max_tile, preferring tiles that leave
    >= 2 steps on the batch grid axis so both TensorCores (megacore / v7x) get work."""
    divisors = [t for t in range(1, min(batch, max_tile) + 1) if batch % t == 0]
    multi = [t for t in divisors if batch // t >= 2]
    return max(multi) if multi else max(divisors)


def _ln(x, g, b):
    """Row-wise LayerNorm over the last dim (eps = 1e-5, like CLIP), in f32."""
    mu = jnp.mean(x, axis=-1, keepdims=True)
    var = jnp.mean((x - mu) ** 2, axis=-1, keepdims=True)
    return (x - mu) * jax.lax.rsqrt(var + EPS_LN) * g + b


def _zero_map(*args, nd):
    return (0,) * nd


def _layer_map(b, l, *, nd):
    # stacked per-layer weight: pick layer `l`, leading dim squeezed in-kernel.
    return (l,) + (0,) * (nd - 1)


# ---------------------------------------------------------------------------
# Kernel 1: patch embedding (conv-as-matmul, batched over a batch tile)
#           + CLS token + pos emb + pre-LN, all in one dense (Bt*S, D) store.
# The patch input has a zero row at each sample's CLS slot, so a precomputed
# (pos_emb + cls) additive table finishes the embedding without concatenation.
# ---------------------------------------------------------------------------
def embed_kernel(patch_ref, w_ref, add_ref, g_ref, b_ref, out_ref):
    emb = jnp.dot(patch_ref[...], w_ref[...],
                  preferred_element_type=jnp.float32)            # (Bt*S, D) f32
    out_ref[...] = _ln(emb + add_ref[...], g_ref[...], b_ref[...])


def patch_embed(patches, params, *, batch_tile):
    # patches: (G, Bt*S, K) bf16 with a zero row at every CLS slot
    G, MS, K = patches.shape
    S, D = params["pos_emb"].shape
    cls_rows = jnp.concatenate(
        [params["cls_emb"], jnp.zeros((S - 1, D), params["cls_emb"].dtype)], axis=0)
    add_tab = jnp.tile(params["pos_emb"] + cls_rows, (batch_tile, 1))  # (Bt*S, D) f32
    w = params["patch_w"].astype(jnp.bfloat16)
    g, b = params["pre_ln_g"], params["pre_ln_b"]

    in_specs = [
        pl.BlockSpec((None, MS, K), lambda i: (i, 0, 0)),
        pl.BlockSpec(w.shape, functools.partial(_zero_map, nd=2)),
        pl.BlockSpec(add_tab.shape, functools.partial(_zero_map, nd=2)),
        pl.BlockSpec(g.shape, functools.partial(_zero_map, nd=2)),
        pl.BlockSpec(b.shape, functools.partial(_zero_map, nd=2)),
    ]
    return pl.pallas_call(
        embed_kernel,
        out_shape=jax.ShapeDtypeStruct((G, MS, D), jnp.float32),
        grid=(G,),
        in_specs=in_specs,
        out_specs=pl.BlockSpec((None, MS, D), lambda i: (i, 0, 0)),
        compiler_params=pltpu.CompilerParams(
            dimension_semantics=("parallel",),
            vmem_limit_bytes=_vmem_limit_bytes()),
        cost_estimate=pl.CostEstimate(
            flops=int(2 * G * MS * K * D),
            transcendentals=0,
            bytes_accessed=int(G * MS * K * 2 + K * D * 2 + G * MS * D * 4)),
    )(patches, w, add_tab, g, b)


# ---------------------------------------------------------------------------
# Kernel 2: full CLIP encoder stack, grid = (batch_tiles, layer).
# The (Bt*S, D) hidden state stays resident in the output VMEM block across the
# layer axis (accumulator pattern); stacked bf16 per-layer weight slabs stream
# in once per (batch tile, layer).  QKV is a single fused matmul with the
# softmax scale folded into wq/bq; head contexts are written straight into a
# bf16 VMEM scratch slab that feeds one full-width output projection.
# ---------------------------------------------------------------------------
def encoder_stack_kernel(h_in_ref, ln1g, ln1b, wqkv, bqkv, wo, bo,
                         ln2g, ln2b, w1, b1, w2, b2,
                         out_ref, qkv_ref, ctx_ref, *, num_heads, batch_tile):
    l = pl.program_id(1)

    @pl.when(l == 0)
    def _():
        out_ref[...] = h_in_ref[...]               # seed the resident hidden state

    M, D = out_ref.shape                           # M = Bt * S
    S = M // batch_tile
    H = num_heads
    dh = D // H

    # --- self attention ---
    x = _ln(out_ref[...], ln1g[...], ln1b[...]).astype(jnp.bfloat16)       # (M, D)
    qkv = jnp.dot(x, wqkv[...], preferred_element_type=jnp.float32) + bqkv[...]
    qkv_ref[...] = qkv.astype(jnp.bfloat16)        # (M, 3D) bf16 staging slab

    for b in range(batch_tile):                    # small static loops: only the
        r0 = b * S                                 # (S,S) attention math lives here
        for hh in range(H):
            c0 = hh * dh
            qh = qkv_ref[r0:r0 + S, c0:c0 + dh]
            kh = qkv_ref[r0:r0 + S, D + c0:D + c0 + dh]
            vh = qkv_ref[r0:r0 + S, 2 * D + c0:2 * D + c0 + dh]
            s = jnp.dot(qh, kh.T, preferred_element_type=jnp.float32)      # (S, S)
            s = s - jnp.max(s, axis=-1, keepdims=True)
            p = jnp.exp(s)
            p = p * pl.reciprocal(jnp.sum(p, axis=-1, keepdims=True), approx=True)
            ctx_ref[r0:r0 + S, c0:c0 + dh] = jnp.dot(
                p.astype(jnp.bfloat16), vh,
                preferred_element_type=jnp.float32).astype(jnp.bfloat16)

    attn = jnp.dot(ctx_ref[...], wo[...],
                   preferred_element_type=jnp.float32) + bo[...]           # one K=D matmul
    out_ref[...] = out_ref[...] + attn

    # --- MLP (quick_gelu) ---
    y = _ln(out_ref[...], ln2g[...], ln2b[...]).astype(jnp.bfloat16)
    y1 = jnp.dot(y, w1[...], preferred_element_type=jnp.float32) + b1[...]
    y1 = y1 * jax.nn.sigmoid(1.702 * y1)
    y2 = jnp.dot(y1.astype(jnp.bfloat16), w2[...],
                 preferred_element_type=jnp.float32) + b2[...]
    out_ref[...] = out_ref[...] + y2


def encoder_stack(hidden, params, *, num_heads, batch_tile):
    G, M, D = hidden.shape                         # hidden: (B//Bt, Bt*S, D) f32
    L = params["wq"].shape[0]
    inter = params["w1"].shape[-1]
    S = M // batch_tile
    scale = float(D // num_heads) ** -0.5
    bf = lambda w: w.astype(jnp.bfloat16)

    # Fuse Q|K|V and fold the softmax scale into the Q weights/bias.
    wqkv = bf(jnp.concatenate(
        [params["wq"] * scale, params["wk"], params["wv"]], axis=-1))      # (L, D, 3D)
    bqkv = jnp.concatenate(
        [params["bq"] * scale, params["bk"], params["bv"]], axis=-1)       # (L, 1, 3D)

    weights = [
        params["ln1_g"], params["ln1_b"],
        wqkv, bqkv,
        bf(params["wo"]), params["bo"],
        params["ln2_g"], params["ln2_b"],
        bf(params["w1"]), params["b1"],
        bf(params["w2"]), params["b2"],
    ]
    in_specs = [pl.BlockSpec((None, M, D), lambda b, l: (b, 0, 0))]
    in_specs += [pl.BlockSpec((None,) + w.shape[1:],
                              functools.partial(_layer_map, nd=w.ndim))
                 for w in weights]

    wbytes = sum(int(w.size) * w.dtype.itemsize for w in weights)
    flops = G * L * (2 * M * D * (4 * D + 2 * inter) + 4 * M * S * D)
    trans = G * L * (batch_tile * num_heads * S * S + M * inter)
    bytes_accessed = G * wbytes + 2 * G * M * D * 4

    return pl.pallas_call(
        functools.partial(encoder_stack_kernel,
                          num_heads=num_heads, batch_tile=batch_tile),
        out_shape=jax.ShapeDtypeStruct((G, M, D), jnp.float32),
        grid=(G, L),
        in_specs=in_specs,
        out_specs=pl.BlockSpec((None, M, D), lambda b, l: (b, 0, 0)),
        scratch_shapes=[pltpu.VMEM((M, 3 * D), jnp.bfloat16),   # fused QKV slab
                        pltpu.VMEM((M, D), jnp.bfloat16)],      # head-context slab
        compiler_params=pltpu.CompilerParams(
            dimension_semantics=("parallel", "arbitrary"),
            vmem_limit_bytes=_vmem_limit_bytes()),
        cost_estimate=pl.CostEstimate(flops=int(flops), transcendentals=int(trans),
                                      bytes_accessed=int(bytes_accessed)),
    )(hidden, *weights)


# ---------------------------------------------------------------------------
# Kernel 3: post-LN on CLS token, visual projection, L2 normalize
# ---------------------------------------------------------------------------
def head_kernel(cls_ref, g_ref, b_ref, proj_ref, out_ref):
    x = _ln(cls_ref[...], g_ref[...], b_ref[...])                         # (B, D) f32
    f = jnp.dot(x.astype(jnp.bfloat16), proj_ref[...],
                preferred_element_type=jnp.float32)                       # (B, P)
    ss = jnp.sum(f * f, axis=-1, keepdims=True)
    out_ref[...] = f * jax.lax.rsqrt(jnp.maximum(ss, 1e-24))              # F.normalize(p=2)


def head(cls_tok, params):
    B, D = cls_tok.shape
    P = params["proj_w"].shape[1]
    g, b = params["post_ln_g"], params["post_ln_b"]
    proj = params["proj_w"].astype(jnp.bfloat16)
    in_specs = [pl.BlockSpec((B, D), functools.partial(_zero_map, nd=2)),
                pl.BlockSpec(g.shape, functools.partial(_zero_map, nd=2)),
                pl.BlockSpec(b.shape, functools.partial(_zero_map, nd=2)),
                pl.BlockSpec(proj.shape, functools.partial(_zero_map, nd=2))]
    return pl.pallas_call(
        head_kernel,
        out_shape=jax.ShapeDtypeStruct((B, P), jnp.float32),
        grid=(1,),
        in_specs=in_specs,
        out_specs=pl.BlockSpec((B, P), functools.partial(_zero_map, nd=2)),
        compiler_params=pltpu.CompilerParams(vmem_limit_bytes=_vmem_limit_bytes()),
        cost_estimate=pl.CostEstimate(
            flops=int(2 * B * D * P), transcendentals=0,
            bytes_accessed=int(B * D * 4 + D * P * 2 + B * P * 4)),
    )(cls_tok, g, b, proj)


# ---------------------------------------------------------------------------
# Glue: patch extraction, parameter init, full forward, pure-JAX reference
# ---------------------------------------------------------------------------
def extract_patches(image, p):
    # image: (B, C, H, W) NCHW -> (B, num_patches, C*p*p), matching Conv2d(stride=p)
    B, C, H, W = image.shape
    x = image.reshape(B, C, H // p, p, W // p, p)
    x = x.transpose(0, 2, 4, 1, 3, 5)                                    # (B, Hp, Wp, C, p, p)
    return x.reshape(B, (H // p) * (W // p), C * p * p)


def init_params(key, *, C, p, img, D, layers, inter, proj):
    K = C * p * p
    N = (img // p) ** 2
    S = N + 1
    keys = iter(jax.random.split(key, 64))

    def nrm(shape, scale=0.02):
        return scale * jax.random.normal(next(keys), shape, jnp.float32)

    return dict(
        patch_w=nrm((K, D)),                     # conv weight, flattened & transposed
        cls_emb=nrm((1, D)),
        pos_emb=nrm((S, D)),
        pre_ln_g=1.0 + nrm((1, D), 0.1), pre_ln_b=nrm((1, D), 0.1),
        post_ln_g=1.0 + nrm((1, D), 0.1), post_ln_b=nrm((1, D), 0.1),
        proj_w=nrm((D, proj)),                   # visual_projection (no bias)
        # stacked per-layer weights (leading dim = layers)
        ln1_g=1.0 + nrm((layers, 1, D), 0.1), ln1_b=nrm((layers, 1, D), 0.1),
        wq=nrm((layers, D, D)), bq=nrm((layers, 1, D)),
        wk=nrm((layers, D, D)), bk=nrm((layers, 1, D)),
        wv=nrm((layers, D, D)), bv=nrm((layers, 1, D)),
        wo=nrm((layers, D, D)), bo=nrm((layers, 1, D)),
        ln2_g=1.0 + nrm((layers, 1, D), 0.1), ln2_b=nrm((layers, 1, D), 0.1),
        w1=nrm((layers, D, inter)), b1=nrm((layers, 1, inter)),
        w2=nrm((layers, inter, D)), b2=nrm((layers, 1, D)),
    )


def plip_forward(image, params, *, patch, num_heads, batch_tile=None):
    B = image.shape[0]
    S, D = params["pos_emb"].shape
    bt = batch_tile if batch_tile is not None else _pick_batch_tile(B)
    assert B % bt == 0, "batch tile must divide the batch"
    G = B // bt

    patches = extract_patches(image, patch)                      # (B, N, K)
    patches = jnp.pad(patches, ((0, 0), (1, 0), (0, 0)))         # zero row at CLS slot -> (B, S, K)
    K = patches.shape[-1]
    patches = patches.reshape(G, bt * S, K).astype(jnp.bfloat16)  # free reshape (contiguous)

    hidden = patch_embed(patches, params, batch_tile=bt)          # (G, bt*S, D)
    hidden = encoder_stack(hidden, params, num_heads=num_heads, batch_tile=bt)
    cls_tok = hidden.reshape(B, S, D)[:, 0, :]                    # (B, D)
    return head(cls_tok, params)


def plip_ref(image, params, *, patch, num_heads):
    """Pure-JAX reference mirroring the kernel's bf16-operand / f32-accum recipe
    (softmax scale folded into wq/bq, like the kernel)."""
    bf = lambda w: w.astype(jnp.bfloat16)
    patches = extract_patches(image, patch).astype(jnp.bfloat16)
    emb = jnp.einsum("bnk,kd->bnd", patches, bf(params["patch_w"]),
                     preferred_element_type=jnp.float32)
    B, _, D = emb.shape
    cls = jnp.broadcast_to(params["cls_emb"][None], (B, 1, D))
    x = jnp.concatenate([cls, emb], axis=1) + params["pos_emb"][None]
    x = _ln(x, params["pre_ln_g"], params["pre_ln_b"])

    L = params["wq"].shape[0]
    H = num_heads
    dh = D // H
    scale = float(dh) ** -0.5
    for l in range(L):
        res = x
        y = _ln(x, params["ln1_g"][l], params["ln1_b"][l]).astype(jnp.bfloat16)
        q = jnp.einsum("bsd,de->bse", y, bf(params["wq"][l] * scale),
                       preferred_element_type=jnp.float32) + params["bq"][l] * scale
        k = jnp.einsum("bsd,de->bse", y, bf(params["wk"][l]),
                       preferred_element_type=jnp.float32) + params["bk"][l]
        v = jnp.einsum("bsd,de->bse", y, bf(params["wv"][l]),
                       preferred_element_type=jnp.float32) + params["bv"][l]
        S = q.shape[1]
        qh = q.reshape(B, S, H, dh).transpose(0, 2, 1, 3).astype(jnp.bfloat16)
        kh = k.reshape(B, S, H, dh).transpose(0, 2, 1, 3).astype(jnp.bfloat16)
        vh = v.reshape(B, S, H, dh).transpose(0, 2, 1, 3).astype(jnp.bfloat16)
        s = jnp.einsum("bhqd,bhkd->bhqk", qh, kh, preferred_element_type=jnp.float32)
        att = jax.nn.softmax(s, axis=-1)
        o = jnp.einsum("bhqk,bhkd->bhqd", att.astype(jnp.bfloat16), vh,
                       preferred_element_type=jnp.float32)
        o = o.transpose(0, 2, 1, 3).reshape(B, S, D).astype(jnp.bfloat16)
        x = res + jnp.einsum("bsd,de->bse", o, bf(params["wo"][l]),
                             preferred_element_type=jnp.float32) + params["bo"][l]
        res = x
        y = _ln(x, params["ln2_g"][l], params["ln2_b"][l]).astype(jnp.bfloat16)
        y1 = jnp.einsum("bsd,di->bsi", y, bf(params["w1"][l]),
                        preferred_element_type=jnp.float32) + params["b1"][l]
        y1 = y1 * jax.nn.sigmoid(1.702 * y1)
        y2 = jnp.einsum("bsi,id->bsd", y1.astype(jnp.bfloat16), bf(params["w2"][l]),
                        preferred_element_type=jnp.float32) + params["b2"][l]
        x = res + y2

    pooled = _ln(x[:, 0, :], params["post_ln_g"], params["post_ln_b"])
    feat = jnp.einsum("bd,dp->bp", pooled.astype(jnp.bfloat16), bf(params["proj_w"]),
                      preferred_element_type=jnp.float32)
    ss = jnp.sum(feat * feat, axis=-1, keepdims=True)
    return feat * jax.lax.rsqrt(jnp.maximum(ss, 1e-24))


if __name__ == "__main__":
    key = jax.random.PRNGKey(0)
    k_img, k_par = jax.random.split(key)

    # Small but shape-consistent ViT config: 16x16 image, 8x8 patches -> 4 patches + CLS.
    # B=4 exercises batch tiling (Bt=2) plus a 2-entry parallel batch grid axis.
    B, C, IMG, PATCH = 4, 3, 16, 8
    D, HEADS, LAYERS, INTER, PROJ = 32, 4, 2, 64, 16

    image = jax.random.normal(k_img, (B, C, IMG, IMG), jnp.float32)     # NCHW
    params = init_params(k_par, C=C, p=PATCH, img=IMG, D=D,
                         layers=LAYERS, inter=INTER, proj=PROJ)

    out = plip_forward(image, params, patch=PATCH, num_heads=HEADS)
    out = jax.block_until_ready(out)

    ref = plip_ref(image, params, patch=PATCH, num_heads=HEADS)
    assert out.shape == (B, PROJ)
    assert jnp.allclose(out, ref, atol=1e-2, rtol=1e-2), "Pallas output != JAX reference"

    print("KERNEL_OK")
</pallas_src>

<mosaic_0001>
module attributes {stable_mosaic.version = 11 : i64} {
  func.func @embed_kernel(%arg0: i32, %arg1: memref<1x10x192xbf16, #tpu.memory_space<vmem>>, %arg2: memref<192x32xbf16, #tpu.memory_space<vmem>>, %arg3: memref<10x32xf32, #tpu.memory_space<vmem>>, %arg4: memref<1x32xf32, #tpu.memory_space<vmem>>, %arg5: memref<1x32xf32, #tpu.memory_space<vmem>>, %arg6: memref<1x10x32xf32, #tpu.memory_space<vmem>>) attributes {dimension_semantics = [#tpu.dimension_semantics<parallel>], iteration_bounds = array<i64: 2>, scalar_prefetch = 0 : i64, scratch_operands = 0 : i64, tpu.core_type = #tpu.core_type<tc>, window_params = [{transform_indices = @transform_0, window_bounds = array<i64: 1, 10, 192>}, {pipeline_mode = #tpu.pipeline_mode<synchronous>, transform_indices = @transform_1, window_bounds = array<i64: 192, 32>}, {pipeline_mode = #tpu.pipeline_mode<synchronous>, transform_indices = @transform_2, window_bounds = array<i64: 10, 32>}, {pipeline_mode = #tpu.pipeline_mode<synchronous>, transform_indices = @transform_3, window_bounds = array<i64: 1, 32>}, {pipeline_mode = #tpu.pipeline_mode<synchronous>, transform_indices = @transform_4, window_bounds = array<i64: 1, 32>}, {transform_indices = @transform_5, window_bounds = array<i64: 1, 10, 32>}]} {
    %c0 = arith.constant 0 : index
    %c0_0 = arith.constant 0 : index
    %c0_1 = arith.constant 0 : index
    %0 = vector.load %arg1[%c0, %c0_0, %c0_1] : memref<1x10x192xbf16, #tpu.memory_space<vmem>>, vector<1x10x192xbf16>
    %1 = vector.shape_cast %0 : vector<1x10x192xbf16> to vector<10x192xbf16>
    %c0_2 = arith.constant 0 : index
    %c0_3 = arith.constant 0 : index
    %2 = vector.load %arg2[%c0_2, %c0_3] : memref<192x32xbf16, #tpu.memory_space<vmem>>, vector<192x32xbf16>
    %cst = arith.constant dense<0.000000e+00> : vector<10x32xf32>
    %3 = tpu.matmul %1, %2, %cst {dimension_numbers = #tpu.dot_dimension_numbers<[1], [0], [0], [1], [0, 0, 1, 1], [], []>} : vector<10x192xbf16>, vector<192x32xbf16>, vector<10x32xf32> -> vector<10x32xf32>
    %c0_4 = arith.constant 0 : index
    %c0_5 = arith.constant 0 : index
    %4 = vector.load %arg3[%c0_4, %c0_5] : memref<10x32xf32, #tpu.memory_space<vmem>>, vector<10x32xf32>
    %5 = arith.addf %3, %4 : vector<10x32xf32>
    %c0_6 = arith.constant 0 : index
    %c0_7 = arith.constant 0 : index
    %6 = vector.load %arg4[%c0_6, %c0_7] : memref<1x32xf32, #tpu.memory_space<vmem>>, vector<1x32xf32>
    %c0_8 = arith.constant 0 : index
    %c0_9 = arith.constant 0 : index
    %7 = vector.load %arg5[%c0_8, %c0_9] : memref<1x32xf32, #tpu.memory_space<vmem>>, vector<1x32xf32>
    %cst_10 = arith.constant dense<0.000000e+00> : vector<10xf32>
    %8 = vector.multi_reduction <add>, %5, %cst_10 [1] : vector<10x32xf32> to vector<10xf32>
    %9 = vector.shape_cast %8 : vector<10xf32> to vector<10x1xf32>
    %cst_11 = arith.constant 3.200000e+01 : f32
    %10 = vector.broadcast %cst_11 : f32 to vector<10x1xf32>
    %11 = arith.divf %9, %10 : vector<10x1xf32>
    %12 = vector.broadcast %11 : vector<10x1xf32> to vector<10x32xf32>
    %13 = arith.subf %5, %12 : vector<10x32xf32>
    %14 = arith.mulf %13, %13 : vector<10x32xf32>
    %cst_12 = arith.constant dense<0.000000e+00> : vector<10xf32>
    %15 = vector.multi_reduction <add>, %14, %cst_12 [1] : vector<10x32xf32> to vector<10xf32>
    %16 = vector.shape_cast %15 : vector<10xf32> to vector<10x1xf32>
    %cst_13 = arith.constant 3.200000e+01 : f32
    %17 = vector.broadcast %cst_13 : f32 to vector<10x1xf32>
    %18 = arith.divf %16, %17 : vector<10x1xf32>
    %19 = vector.broadcast %11 : vector<10x1xf32> to vector<10x32xf32>
    %20 = arith.subf %5, %19 : vector<10x32xf32>
    %cst_14 = arith.constant 9.99999974E-6 : f32
    %21 = vector.broadcast %cst_14 : f32 to vector<10x1xf32>
    %22 = arith.addf %18, %21 : vector<10x1xf32>
    %23 = math.rsqrt %22 : vector<10x1xf32>
    %24 = vector.broadcast %23 : vector<10x1xf32> to vector<10x32xf32>
    %25 = arith.mulf %20, %24 : vector<10x32xf32>
    %26 = vector.broadcast %6 : vector<1x32xf32> to vector<10x32xf32>
    %27 = arith.mulf %25, %26 : vector<10x32xf32>
    %28 = vector.broadcast %7 : vector<1x32xf32> to vector<10x32xf32>
    %29 = arith.addf %27, %28 : vector<10x32xf32>
    %c0_15 = arith.constant 0 : index
    %c0_16 = arith.constant 0 : index
    %c0_17 = arith.constant 0 : index
    %30 = vector.load %arg6[%c0_15, %c0_16, %c0_17] : memref<1x10x32xf32, #tpu.memory_space<vmem>>, vector<1x10x32xf32>
    %31 = vector.shape_cast %30 : vector<1x10x32xf32> to vector<10x32xf32>
    %32 = vector.shape_cast %29 : vector<10x32xf32> to vector<1x10x32xf32>
    tpu.vector_store %arg6[%c0_15, %c0_16, %c0_17], %32 {strides = array<i32>} : memref<1x10x32xf32, #tpu.memory_space<vmem>>, vector<1x10x32xf32>,
    return
  }
  func.func @transform_0(%arg0: i32) -> (i32, i32, i32) {
    %c0_i32 = arith.constant 0 : i32
    %c0_i32_0 = arith.constant 0 : i32
    %c0_i32_1 = arith.constant 0 : i32
    return %arg0, %c0_i32, %c0_i32_0 : i32, i32, i32
  }
  func.func @transform_1(%arg0: i32) -> (i32, i32) {
    %c0_i32 = arith.constant 0 : i32
    %c0_i32_0 = arith.constant 0 : i32
    %c0_i32_1 = arith.constant 0 : i32
    return %c0_i32, %c0_i32_0 : i32, i32
  }
  func.func @transform_2(%arg0: i32) -> (i32, i32) {
    %c0_i32 = arith.constant 0 : i32
    %c0_i32_0 = arith.constant 0 : i32
    %c0_i32_1 = arith.constant 0 : i32
    return %c0_i32, %c0_i32_0 : i32, i32
  }
  func.func @transform_3(%arg0: i32) -> (i32, i32) {
    %c0_i32 = arith.constant 0 : i32
    %c0_i32_0 = arith.constant 0 : i32
    %c0_i32_1 = arith.constant 0 : i32
    return %c0_i32, %c0_i32_0 : i32, i32
  }
  func.func @transform_4(%arg0: i32) -> (i32, i32) {
    %c0_i32 = arith.constant 0 : i32
    %c0_i32_0 = arith.constant 0 : i32
    %c0_i32_1 = arith.constant 0 : i32
    return %c0_i32, %c0_i32_0 : i32, i32
  }
  func.func @transform_5(%arg0: i32) -> (i32, i32, i32) {
    %c0_i32 = arith.constant 0 : i32
    %c0_i32_0 = arith.constant 0 : i32
    %c0_i32_1 = arith.constant 0 : i32
    return %arg0, %c0_i32, %c0_i32_0 : i32, i32, i32
  }
}

</mosaic_0001>

<llo_original>
// kernel: tpu_custom_call.1
$region0: #{tpu_custom_call.1}
  #allocation0 [shape = 'u32[]', space=smem, size = 0x4, offset = 0x4, fixed_abs, tag = 'smem constant byte address 0x4 - core index']
  #allocation1 [shape = 'u32[144,128]{1,0:T(1,128)}', space=vmem, size = 0x12000, scoped, tag = 'internal scratch']
  %s0 = inlined_call_operand.vmem [shape: bf16[2,10,192], index: 0, kind: input, shape index: {}]
  %s1 = inlined_call_operand.vmem [shape: bf16[192,32], index: 1, kind: input, shape index: {}]
  %s2 = inlined_call_operand.vmem [shape: f32[10,32], index: 2, kind: input, shape index: {}]
  %s3 = inlined_call_operand.vmem [shape: f32[1,32], index: 3, kind: input, shape index: {}]
  %s4 = inlined_call_operand.vmem [shape: f32[1,32], index: 4, kind: input, shape index: {}]
  %s5 = inlined_call_operand.vmem [shape: f32[2,10,32], index: 5, kind: output, shape index: {}]
  %s6 = sld [smem:[#allocation0]]
  $region53: #{tpu_custom_call.1} parent=0
    _
  %s8 = ssub.s32 1, %s6
  %s9 = scalar_select 0, %s8, %s6
  loop: start=0, step=1, limit=4
  $region2: #{tpu_custom_call.1} parent=0 // loop_pre_header
    _
  $region3: #{tpu_custom_call.1} parent=0 // loop_header
    %s11 = sphi 0, %s15
    %p12 = scmp.ge.s32.totalorder %s11, 4
    %s21 = sphi 0, %s23
    %s24 = sphi 0, %s21
    %s25 = sphi 0, %s24
    %s41 = sphi 0, %s25
    %s45 = sphi 0, %s45
    %s47 = sphi 0, %s45
    %s48 = sphi 0, %s47
    %s62 = sphi 0, %s48
    %s66 = sphi 0, %s66
    %s68 = sphi 0, %s66
    %s69 = sphi 0, %s68
    %s83 = sphi 0, %s69
    %s87 = sphi 0, %s87
    %s89 = sphi 0, %s87
    %s90 = sphi 0, %s89
    %s104 = sphi 0, %s90
    %s108 = sphi 0, %s108
    %s110 = sphi 0, %s108
    %s111 = sphi 0, %s110
    %s125 = sphi 0, %s111
    %s131 = sphi 0, %s133
    %s134 = sphi 0, %s131
    %s135 = sphi 0, %s134
    %s151 = sphi 0, %s135
  $region4: #{tpu_custom_call.1} parent=0 // loop_header_branch
    %14 = sbr.rel (%p12) target = $region8
  $region5: #{tpu_custom_call.1} parent=0 // loop_body
    %s16 = ssub.s32 %s11, 1
    %s17 = ssub.s32 %s11, 2
    %s18 = sadd.s32 %s11, 1
    %s19 = ssub.s32 %s11, %s18
    %p20 = scmp.eq.s32.totalorder %s19, 0
    %s22 = sadd.s32 %s21, 1
    %s23 = scalar_select %p20, %s21, %s22
    %p26 = pneg %p20
    %p27 = scmp.eq.s32.totalorder %s11, 1
    %p28 = por %p26, %p27
    %p29 = scmp.ne.s32.totalorder %s21, %s24
    %p30 = scmp.eq.s32.totalorder %s11, 0
    %p31 = por %p29, %p30
    %p32 = scmp.ne.s32.totalorder %s21, %s24
    %p33 = scmp.eq.s32.totalorder %s16, 1
    %p34 = por %p32, %p33
    %p35 = scmp.ne.s32.totalorder %s24, %s25
    %p36 = scmp.eq.s32.totalorder %s16, 0
    %p37 = por %p35, %p36
    %p38 = scmp.ne.s32.totalorder %s24, %s25
    %p39 = scmp.eq.s32.totalorder %s17, 1
    %p40 = por %p38, %p39
    %p42 = scmp.ne.s32.totalorder %s25, %s41
    %p43 = scmp.eq.s32.totalorder %s17, 0
    %p44 = por %p42, %p43
    %s46 = sadd.s32 %s45, 1
    %p49 = scmp.eq.s32.totalorder %s11, 1
    %p50 = scmp.ne.s32.totalorder %s45, %s47
    %p51 = scmp.eq.s32.totalorder %s11, 0
    %p52 = por %p50, %p51
    %p53 = scmp.ne.s32.totalorder %s45, %s47
    %p54 = scmp.eq.s32.totalorder %s16, 1
    %p55 = por %p53, %p54
    %p56 = scmp.ne.s32.totalorder %s47, %s48
    %p57 = scmp.eq.s32.totalorder %s16, 0
    %p58 = por %p56, %p57
    %p59 = scmp.ne.s32.totalorder %s47, %s48
    %p60 = scmp.eq.s32.totalorder %s17, 1
    %p61 = por %p59, %p60
    %p63 = scmp.ne.s32.totalorder %s48, %s62
    %p64 = scmp.eq.s32.totalorder %s17, 0
    %p65 = por %p63, %p64
    %s67 = sadd.s32 %s66, 1
    %p70 = scmp.eq.s32.totalorder %s11, 1
    %p71 = scmp.ne.s32.totalorder %s66, %s68
    %p72 = scmp.eq.s32.totalorder %s11, 0
    %p73 = por %p71, %p72
    %p74 = scmp.ne.s32.totalorder %s66, %s68
    %p75 = scmp.eq.s32.totalorder %s16, 1
    %p76 = por %p74, %p75
    %p77 = scmp.ne.s32.totalorder %s68, %s69
    %p78 = scmp.eq.s32.totalorder %s16, 0
    %p79 = por %p77, %p78
    %p80 = scmp.ne.s32.totalorder %s68, %s69
    %p81 = scmp.eq.s32.totalorder %s17, 1
    %p82 = por %p80, %p81
    %p84 = scmp.ne.s32.totalorder %s69, %s83
    %p85 = scmp.eq.s32.totalorder %s17, 0
    %p86 = por %p84, %p85
    %s88 = sadd.s32 %s87, 1
    %p91 = scmp.eq.s32.totalorder %s11, 1
    %p92 = scmp.ne.s32.totalorder %s87, %s89
    %p93 = scmp.eq.s32.totalorder %s11, 0
    %p94 = por %p92, %p93
    %p95 = scmp.ne.s32.totalorder %s87, %s89
    %p96 = scmp.eq.s32.totalorder %s16, 1
    %p97 = por %p95, %p96
    %p98 = scmp.ne.s32.totalorder %s89, %s90
    %p99 = scmp.eq.s32.totalorder %s16, 0
    %p100 = por %p98, %p99
    %p101 = scmp.ne.s32.totalorder %s89, %s90
    %p102 = scmp.eq.s32.totalorder %s17, 1
    %p103 = por %p101, %p102
    %p105 = scmp.ne.s32.totalorder %s90, %s104
    %p106 = scmp.eq.s32.totalorder %s17, 0
    %p107 = por %p105, %p106
    %s109 = sadd.s32 %s108, 1
    %p112 = scmp.eq.s32.totalorder %s11, 1
    %p113 = scmp.ne.s32.totalorder %s108, %s110
    %p114 = scmp.eq.s32.totalorder %s11, 0
    %p115 = por %p113, %p114
    %p116 = scmp.ne.s32.totalorder %s108, %s110
    %p117 = scmp.eq.s32.totalorder %s16, 1
    %p118 = por %p116, %p117
    %p119 = scmp.ne.s32.totalorder %s110, %s111
    %p120 = scmp.eq.s32.totalorder %s16, 0
    %p121 = por %p119, %p120
    %p122 = scmp.ne.s32.totalorder %s110, %s111
    %p123 = scmp.eq.s32.totalorder %s17, 1
    %p124 = por %p122, %p123
    %p126 = scmp.ne.s32.totalorder %s111, %s125
    %p127 = scmp.eq.s32.totalorder %s17, 0
    %p128 = por %p126, %p127
    %s129 = ssub.s32 %s11, %s18
    %p130 = scmp.eq.s32.totalorder %s129, 0
    %s132 = sadd.s32 %s131, 1
    %s133 = scalar_select %p130, %s131, %s132
    %p136 = pneg %p130
    %p137 = scmp.eq.s32.totalorder %s11, 1
    %p138 = por %p136, %p137
    %p139 = scmp.ne.s32.totalorder %s131, %s134
    %p140 = scmp.eq.s32.totalorder %s11, 0
    %p141 = por %p139, %p140
    %p142 = scmp.ne.s32.totalorder %s131, %s134
    %p143 = scmp.eq.s32.totalorder %s16, 1
    %p144 = por %p142, %p143
    %p145 = scmp.ne.s32.totalorder %s134, %s135
    %p146 = scmp.eq.s32.totalorder %s16, 0
    %p147 = por %p145, %p146
    %p148 = scmp.ne.s32.totalorder %s134, %s135
    %p149 = scmp.eq.s32.totalorder %s17, 1
    %p150 = por %p148, %p149
    %p152 = scmp.ne.s32.totalorder %s135, %s151
    %p153 = scmp.eq.s32.totalorder %s17, 0
    %p154 = por %p152, %p153
    %p155 = scmp.le.s32.totalorder 1, %s11
    %p156 = scmp.lt.s32.totalorder %s11, 3
    %p157 = pnand %p155, %p156
    %p158 = pneg %p157
    // Predicated region
    $region9: #{tpu_custom_call.1} parent=5 // pred_check
      _
    $region10: #{tpu_custom_call.1} parent=5 // pred_check_branch
      %160 = sbr.rel (%p157) target = $region12
    $region11: #{tpu_custom_call.1} parent=5 // pred_region
      %s161 = ssub.s32 %s11, 1
      // Predicated region
      $region13: #{tpu_custom_call.1} parent=11 // pred_check
        %p162 = pneg %p58
      $region14: #{tpu_custom_call.1} parent=11 // pred_check_branch
        %164 = sbr.rel (%p162) target = $region16
      $region15: #{tpu_custom_call.1} parent=11 // pred_region
        _
      $region16: #{tpu_custom_call.1} parent=11 // pred_fallthru
        _
      // Predicated region
      $region17: #{tpu_custom_call.1} parent=11 // pred_check
        %p165 = pneg %p79
      $region18: #{tpu_custom_call.1} parent=11 // pred_check_branch
        %167 = sbr.rel (%p165) target = $region20
      $region19: #{tpu_custom_call.1} parent=11 // pred_region
        _
      $region20: #{tpu_custom_call.1} parent=11 // pred_fallthru
        _
      // Predicated region
      $region21: #{tpu_custom_call.1} parent=11 // pred_check
        %p168 = pneg %p100
      $region22: #{tpu_custom_call.1} parent=11 // pred_check_branch
        %170 = sbr.rel (%p168) target = $region24
      $region23: #{tpu_custom_call.1} parent=11 // pred_region
        _
      $region24: #{tpu_custom_call.1} parent=11 // pred_fallthru
        _
      // Predicated region
      $region25: #{tpu_custom_call.1} parent=11 // pred_check
        %p171 = pneg %p121
      $region26: #{tpu_custom_call.1} parent=11 // pred_check_branch
        %173 = sbr.rel (%p171) target = $region28
      $region27: #{tpu_custom_call.1} parent=11 // pred_region
        _
      $region28: #{tpu_custom_call.1} parent=11 // pred_fallthru
        _
    $region12: #{tpu_custom_call.1} parent=5 // pred_fallthru
      _
    %p174 = scmp.lt.s32.totalorder %s11, 2
    // Predicated region
    $region29: #{tpu_custom_call.1} parent=5 // pred_check
      %p175 = pneg %p174
    $region30: #{tpu_custom_call.1} parent=5 // pred_check_branch
      %177 = sbr.rel (%p175) target = $region32
    $region31: #{tpu_custom_call.1} parent=5 // pred_region
      // Predicated region
      $region33: #{tpu_custom_call.1} parent=31 // pred_check
        %p178 = pneg %p31
      $region34: #{tpu_custom_call.1} parent=31 // pred_check_branch
        %180 = sbr.rel (%p178) target = $region36
      $region35: #{tpu_custom_call.1} parent=31 // pred_region
        %p181 = scmp.lt.s32.totalorder %s11, 1
        %s182 = scalar_select %p181, %s11, 1
        %s183 = smul.addr %s182, 4
        %s184 = smul.addr %s183, 4
        %s185 = scalar_lea.vmem %s0, %s184
      $region36: #{tpu_custom_call.1} parent=31 // pred_fallthru
        _
    $region32: #{tpu_custom_call.1} parent=5 // pred_fallthru
      _
    %p186 = scmp.le.s32.totalorder 1, %s11
    %p187 = scmp.lt.s32.totalorder %s11, 3
    %p188 = pnand %p186, %p187
    %p189 = pneg %p188
    // Predicated region
    $region37: #{tpu_custom_call.1} parent=5 // pred_check
      _
    $region38: #{tpu_custom_call.1} parent=5 // pred_check_branch
      %191 = sbr.rel (%p188) target = $region40
    $region39: #{tpu_custom_call.1} parent=5 // pred_region
      %s192 = ssub.s32 %s11, 1
      %p193 = scmp.lt.s32.totalorder %s16, 1
      %s194 = scalar_select %p193, %s16, 1
      %s195 = smul.addr %s194, 4
      %s196 = smul.addr %s195, 4
      %s197 = scalar_lea.vmem %s0, %s196
      %p198 = pneg %p37
      %p199 = pneg %p34
      %p200 = pneg %p58
      %p201 = pneg %p55
      %p202 = pneg %p79
      %p203 = pneg %p76
      %p204 = pneg %p100
      %p205 = pneg %p97
      %p206 = pneg %p121
      %p207 = pneg %p118
      %p208 = pneg %p147
      %p209 = pneg %p144
      %p210 = scmp.lt.s32.totalorder %s16, 1
      %s211 = scalar_select %p210, %s16, 1
      %s212 = smul.addr %s211, 2
      %s213 = smul.addr %s212, 8
      %s214 = scalar_lea.vmem %s5, %s213
      %p215 = scmp.lt.s32.totalorder %s16, 1
      %s216 = scalar_select %p215, %s16, 1
      %s217 = smul.addr %s216, 4
      %s218 = smul.addr %s217, 4
      %s219 = scalar_lea.vmem %s0, %s218
      %p220 = scmp.lt.s32.totalorder %s16, 1
      %s221 = scalar_select %p220, %s16, 1
      %s222 = smul.addr %s221, 2
      %s223 = smul.addr %s222, 8
      %s224 = scalar_lea.vmem %s5, %s223
      %v226 = vld [vmem:[%s219] sm:$0xff]
      %v227 = vld [vmem:[%s219 + $0x8] sm:$0x11]
      %v228 = vld [vmem:[%s1] sm:$0xf]
      %v229 = vld [vmem:[%s1 + $0x4] sm:$0xf]
      %v230 = vld [vmem:[%s1 + $0x8] sm:$0xf]
      %v231 = vld [vmem:[%s1 + $0xc] sm:$0xf]
      %v232 = vld [vmem:[%s1 + $0x10] sm:$0xf]
      %v233 = vld [vmem:[%s1 + $0x14] sm:$0xf]
      %v234 = vld [vmem:[%s1 + $0x18] sm:$0xf]
      %v235 = vld [vmem:[%s1 + $0x1c] sm:$0xf]
      %v236 = vld [vmem:[%s1 + $0x20] sm:$0xf]
      %v237 = vld [vmem:[%s1 + $0x24] sm:$0xf]
      %v238 = vld [vmem:[%s1 + $0x28] sm:$0xf]
      %v239 = vld [vmem:[%s1 + $0x2c] sm:$0xf]
      %v240 = vld [vmem:[%s1 + $0x30] sm:$0xf]
      %v241 = vld [vmem:[%s1 + $0x34] sm:$0xf]
      %v242 = vld [vmem:[%s1 + $0x38] sm:$0xf]
      %v243 = vld [vmem:[%s1 + $0x3c] sm:$0xf]
      %v244 = vld [vmem:[%s1 + $0x40] sm:$0xf]
      %v245 = vld [vmem:[%s1 + $0x44] sm:$0xf]
      %v246 = vld [vmem:[%s1 + $0x48] sm:$0xf]
      %v247 = vld [vmem:[%s1 + $0x4c] sm:$0xf]
      %v248 = vld [vmem:[%s1 + $0x50] sm:$0xf]
      %v249 = vld [vmem:[%s1 + $0x54] sm:$0xf]
      %v250 = vld [vmem:[%s1 + $0x58] sm:$0xf]
      %v251 = vld [vmem:[%s1 + $0x5c] sm:$0xf]
      %v252 = vld [vmem:[%s2] sm:$0xff]
      %v253 = vld [vmem:[%s2 + $0x8] sm:$0x3]
      %v256 = vunpack.c.l.b16 %v226
      %v257 = vunpack.c.h.b16 %v226
      %v258 = vunpack.c.l.b16 %v227
      %v259 = vunpack.c.h.b16 %v227
      %v260 = vpack.c.b16 %v258, %v256
      %v261 = vpack.c.b16 %v259, %v257
      %v287 = vunpack.c.l.b16 %v228
      %v288 = vunpack.c.l.b16 %v229
      %v289 = vunpack.c.l.b16 %v230
      %v290 = vunpack.c.l.b16 %v231
      %v291 = vunpack.c.l.b16 %v232
      %v292 = vunpack.c.l.b16 %v233
      %v293 = vunpack.c.l.b16 %v234
      %v294 = vunpack.c.l.b16 %v235
      %v295 = vunpack.c.l.b16 %v236
      %v296 = vunpack.c.l.b16 %v237
      %v297 = vunpack.c.l.b16 %v238
      %v298 = vunpack.c.l.b16 %v239
      %v299 = vunpack.c.l.b16 %v240
      %v300 = vunpack.c.l.b16 %v241
      %v301 = vunpack.c.l.b16 %v242
      %v302 = vunpack.c.l.b16 %v243
      %v303 = vunpack.c.l.b16 %v244
      %v304 = vunpack.c.l.b16 %v245
      %v305 = vunpack.c.l.b16 %v246
      %v306 = vunpack.c.l.b16 %v247
      %v307 = vunpack.c.l.b16 %v248
      %v308 = vunpack.c.l.b16 %v249
      %v309 = vunpack.c.l.b16 %v250
      %v310 = vunpack.c.l.b16 %v251
      %v311 = vpack.c.b16 %v288, %v287
      %v312 = vpack.c.b16 %v290, %v289
      %v313 = vpack.c.b16 %v292, %v291
      %v314 = vpack.c.b16 %v294, %v293
      %v315 = vpack.c.b16 %v296, %v295
      %v316 = vpack.c.b16 %v298, %v297
      %v317 = vpack.c.b16 %v300, %v299
      %v318 = vpack.c.b16 %v302, %v301
      %v319 = vpack.c.b16 %v304, %v303
      %v320 = vpack.c.b16 %v306, %v305
      %v321 = vpack.c.b16 %v308, %v307
      %v322 = vpack.c.b16 %v310, %v309
      %vm335 = vcmask 523264
      %v337 = vsel %vm335, %v261, 0
      %339 = vmatprep.subr.bf16.mxu0 0
      %340 = vmatpush1.bf16.msra.mxu0 %v318
      %341 = vmatprep.subr.bf16.mxu0 0
      %342 = vmatpush1.bf16.msra.mxu0 %v317
      %343 = vmatprep.subr.bf16.mxu0 0
      %344 = vmatpush1.bf16.msra.mxu0 %v316
      %345 = vmatprep.subr.bf16.mxu0 0
      %346 = vmatpush1.bf16.msra.mxu0 %v315
      %347 = vmatprep.subr.bf16.mxu0 0
      %348 = vmatpush1.bf16.msra.mxu0 %v314
      %349 = vmatprep.subr.bf16.mxu0 0
      %350 = vmatpush1.bf16.msra.mxu0 %v313
      %351 = vmatprep.subr.bf16.mxu0 0
      %352 = vmatpush1.bf16.msra.mxu0 %v312
      %353 = vmatprep.subr.bf16.mxu0 0
      %354 = vmatpush1.bf16.msra.mxu0 %v311
      %355 = vmatprep.subr.bf16.mxu0 0
      %356 = vmatpush2.bf16.msra.mxu0 0
      %357 = vmatprep.subr.bf16.mxu0 0
      %358 = vmatpush2.bf16.msra.mxu0 0
      %359 = vmatprep.subr.bf16.mxu0 0
      %360 = vmatpush2.bf16.msra.mxu0 0
      %361 = vmatprep.subr.bf16.mxu0 0
      %362 = vmatpush2.bf16.msra.mxu0 0
      %363 = vmatprep.subr.bf16.mxu0 0
      %364 = vmatpush2.bf16.msra.mxu0 %v322
      %365 = vmatprep.subr.bf16.mxu0 0
      %366 = vmatpush2.bf16.msra.mxu0 %v321
      %367 = vmatprep.subr.bf16.mxu0 0
      %368 = vmatpush2.bf16.msra.mxu0 %v320
      %369 = vmatprep.subr.bf16.mxu0 0
      %370 = vmatpush2.bf16.msra.mxu0 %v319
      %371 = vmatprep.mubr.bf16.mxu0 %v337
      %372 = vmatmul.mubr.bf16.gmra.mxu0 %v260
      %v373 = vpop.f32.mrf.mxu0
      %v374 = vadd.f32 %v252, %v373
      %v375 = vpop.f32.mrf.mxu0
      %v376 = vpop.f32.mrf.mxu0
      %v377 = vadd.f32 %v253, %v376
      %v378 = vpop.f32.mrf.mxu0
      %379 = vdwg.mxu0
      %v380 = vld [vmem:[%s3] sm:$0x1]
      %v381 = vld [vmem:[%s4] sm:$0x1]
      %vm382 = vcmask 261120
      %v383 = vsel %vm382, %v374, 0.0
      %384 = vadd.xlane.f32.xlu0 %v383
      %v385 = vpop.xlane.xlu0 %384
      %vm386 = vcmask 254976
      %v387 = vsel %vm386, %v377, 0.0
      %388 = vadd.xlane.f32.xlu0 %v387
      %v389 = vpop.xlane.xlu0 %388
      %v390 = vrcp.pop 32.0
      %v391 = vmul.f32 %v385, %v390
      %v392 = vmul.f32 %v389, %v390
      %v393 = vsub.f32 %v374, %v391
      %v394 = vsub.f32 %v377, %v392
      %v395 = vmul.f32 %v393, %v393
      %v396 = vmul.f32 %v394, %v394
      %v397 = vsel %vm382, %v395, 0.0
      %398 = vadd.xlane.f32.xlu0 %v397
      %v399 = vpop.xlane.xlu0 %398
      %v400 = vsel %vm386, %v396, 0.0
      %401 = vadd.xlane.f32.xlu0 %v400
      %v402 = vpop.xlane.xlu0 %401
      %v403 = vmul.f32 %v399, %v390
      %v404 = vmul.f32 %v402, %v390
      %v405 = vadd.f32 %v403, 1e-05
      %v406 = vadd.f32 %v404, 1e-05
      %v407 = vrsqrt.pop %v405
      %v408 = vrsqrt.pop %v406
      %v409 = vmul.f32 %v393, %v407
      %v410 = vmul.f32 %v394, %v408
      %v412 = vlaneseq
      %v413 = vshrl.u32 %v412, 7
      %v414 = vsub.s32 0, %v413
      %v415 = vrot.slane %v380, %v414
      %v417 = vmul.f32 %v409, %v415
      %v418 = vmul.f32 %v410, %v415
      %v420 = vlaneseq
      %v421 = vshrl.u32 %v420, 7
      %v422 = vsub.s32 0, %v421
      %v423 = vrot.slane %v381, %v422
      %v425 = vadd.f32 %v417, %v423
      %v426 = vadd.f32 %v418, %v423
      %427 = vst.msk [vmem:[%s224] sm:$0xff] %vm382, %v425
      %428 = vst.msk [vmem:[%s224 + $0x8] sm:$0x3] %vm386, %v426
      %p429 = scmp.lt.s32.totalorder %s16, 1
      %s430 = scalar_select %p429, %s16, 1
      %s431 = smul.addr %s430, 2
      %s432 = smul.addr %s431, 8
      %s433 = scalar_lea.vmem %s5, %s432
      // Predicated region
      $region41: #{tpu_custom_call.1} parent=39 // pred_check
        %p434 = pneg %p144
      $region42: #{tpu_custom_call.1} parent=39 // pred_check_branch
        %436 = sbr.rel (%p434) target = $region44
      $region43: #{tpu_custom_call.1} parent=39 // pred_region
        _
      $region44: #{tpu_custom_call.1} parent=39 // pred_fallthru
        _
    $region40: #{tpu_custom_call.1} parent=5 // pred_fallthru
      _
    %p437 = scmp.le.s32.totalorder 2, %s11
    // Predicated region
    $region45: #{tpu_custom_call.1} parent=5 // pred_check
      %p438 = pneg %p437
    $region46: #{tpu_custom_call.1} parent=5 // pred_check_branch
      %440 = sbr.rel (%p438) target = $region48
    $region47: #{tpu_custom_call.1} parent=5 // pred_region
      %s441 = ssub.s32 %s11, 2
      // Predicated region
      $region49: #{tpu_custom_call.1} parent=47 // pred_check
        %p442 = pneg %p150
      $region50: #{tpu_custom_call.1} parent=47 // pred_check_branch
        %444 = sbr.rel (%p442) target = $region52
      $region51: #{tpu_custom_call.1} parent=47 // pred_region
        %p445 = scmp.lt.s32.totalorder %s17, 1
        %s446 = scalar_select %p445, %s17, 1
        %s447 = smul.addr %s446, 2
        %s448 = smul.addr %s447, 8
        %s449 = scalar_lea.vmem %s5, %s448
      $region52: #{tpu_custom_call.1} parent=47 // pred_fallthru
        _
    $region48: #{tpu_custom_call.1} parent=5 // pred_fallthru
      _
  $region6: #{tpu_custom_call.1} parent=0 // loop_footer
    %s15 = sadd.s32 1, %s11
  $region7: #{tpu_custom_call.1} parent=0 // loop_footer_branch
    %10 = sbr.rel target = $region3
  $region8: #{tpu_custom_call.1} parent=0 // loop_exit
    _

</llo_original>
